<compile_context>
chip_gen: v5e
topology: v5e:2x2
jax: 0.10.0
libtpu: 0.0.40
codegen_flags: <defaults>
</compile_context>

<pallas_src>
import functools

import numpy as np
import jax
import jax.numpy as jnp
from jax.experimental import pallas as pl
from jax.experimental.pallas import tpu as pltpu


# ----------------------------------------------------------------------------
# Kernels (shared by both layouts; refs are always 2D thanks to Squeezed dims)
# ----------------------------------------------------------------------------
def _dft_kernel(w_ref, x_ref, out_ref):
    # w_ref:   (2T, T)   fused [cos; -sin] DFT basis
    # x_ref:   (T, tn)   lane tile of the input
    # out_ref: (2T, tn)  rows [:T] = real, rows [T:] = imag
    out_ref[...] = jnp.dot(
        w_ref[...], x_ref[...], preferred_element_type=jnp.float32
    ).astype(out_ref.dtype)


def _dft_kernel_acc(w_ref, x_ref, out_ref, acc_ref, *, k_axis):
    # K-tiled variant: accumulate partial products over the contraction axis.
    @pl.when(pl.program_id(k_axis) == 0)
    def _():
        acc_ref[...] = jnp.zeros_like(acc_ref)

    acc_ref[...] += jnp.dot(
        w_ref[...], x_ref[...], preferred_element_type=jnp.float32)

    @pl.when(pl.program_id(k_axis) == pl.num_programs(k_axis) - 1)
    def _():
        out_ref[...] = acc_ref[...].astype(out_ref.dtype)


# ----------------------------------------------------------------------------
# Tiling / compiler-param helpers
# ----------------------------------------------------------------------------
def _round_up(n, m):
    return ((n + m - 1) // m) * m


def _pick_lane_tile(width):
    """width is a multiple of 128.  Prefer >= 2 tiles (v7x megacore split) and
    tiles in [128, 1024] lanes."""
    if width <= 128:
        return width
    cap = min(1024, width // 2)
    cap = max((cap // 128) * 128, 128)
    for tn in range(cap, 0, -128):
        if width % tn == 0:
            return tn
    return 128


def _pick_k_tile(t, itemsize):
    """Tile the contraction only when the (2T, T) basis is big; tk must divide
    T and be a multiple of 128 (otherwise fall back to full-T blocks)."""
    if t % 128 != 0 or 2 * t * t * itemsize <= (8 << 20):
        return t
    for tk in (1024, 512, 256, 128):
        if t % tk == 0 and 2 * t * tk * itemsize <= (4 << 20):
            return tk
    return 128


def _compiler_params(dims, vmem_need):
    kw = dict(dimension_semantics=dims)
    if vmem_need > (16 << 20):
        phys = 64 << 20  # conservative default = v7x per-TC VMEM
        try:
            phys = pltpu.get_tpu_info().vmem_capacity_bytes
        except Exception:
            pass
        kw["vmem_limit_bytes"] = int(min(vmem_need * 5 // 4, phys * 85 // 100))
    return pltpu.CompilerParams(**kw)


# ----------------------------------------------------------------------------
# pallas_call builders
# ----------------------------------------------------------------------------
def _dft_slab(w, x_cols):
    """w: (2T, T); x_cols: (T, BDp) lane-dense slab with BDp % 128 == 0.
    Returns (2T, BDp) f32 (rows [:T] real, rows [T:] imag)."""
    two_t, t = w.shape
    bdp = x_cols.shape[1]
    tn = _pick_lane_tile(bdp)
    tk = _pick_k_tile(t, w.dtype.itemsize)
    nk = t // tk
    itm = w.dtype.itemsize

    cost = pl.CostEstimate(
        flops=2 * two_t * t * bdp,
        transcendentals=0,
        bytes_accessed=(two_t * t * itm
                        + t * bdp * x_cols.dtype.itemsize
                        + two_t * bdp * 4))

    if nk == 1:
        grid = (bdp // tn,)
        in_specs = [pl.BlockSpec((two_t, t), lambda j: (0, 0)),
                    pl.BlockSpec((t, tn), lambda j: (0, j))]
        out_specs = pl.BlockSpec((two_t, tn), lambda j: (0, j))
        scratch = []
        kernel = _dft_kernel
        dims = ("parallel",)
        vmem_need = (2 * two_t * t * itm + 2 * t * tn * itm
                     + 2 * two_t * tn * 4)
    else:
        grid = (bdp // tn, nk)
        in_specs = [pl.BlockSpec((two_t, tk), lambda j, k: (0, k)),
                    pl.BlockSpec((tk, tn), lambda j, k: (k, j))]
        out_specs = pl.BlockSpec((two_t, tn), lambda j, k: (0, j))
        scratch = [pltpu.VMEM((two_t, tn), jnp.float32)]
        kernel = functools.partial(_dft_kernel_acc, k_axis=1)
        dims = ("parallel", "arbitrary")
        vmem_need = (2 * two_t * tk * itm + 2 * tk * tn * itm
                     + 2 * two_t * tn * 4 + two_t * tn * 4)

    return pl.pallas_call(
        kernel,
        out_shape=jax.ShapeDtypeStruct((two_t, bdp), jnp.float32),
        grid_spec=pltpu.PrefetchScalarGridSpec(
            num_scalar_prefetch=0, grid=grid, in_specs=in_specs,
            out_specs=out_specs, scratch_shapes=scratch),
        compiler_params=_compiler_params(dims, vmem_need),
        cost_estimate=cost,
    )(w, x_cols)


def _dft_direct(w, x):
    """w: (2T, T); x: (B, T, D) with D % 128 == 0.  No input re-layout copy:
    the BlockSpec DMA reads x in its native layout.
    Returns (B, 2T, D) f32 (axis 1: [:T] real, [T:] imag)."""
    two_t, t = w.shape
    B, _, D = x.shape
    tnd = _pick_lane_tile(D)
    tk = _pick_k_tile(t, w.dtype.itemsize)
    nk = t // tk
    itm = w.dtype.itemsize

    cost = pl.CostEstimate(
        flops=2 * two_t * t * B * D,
        transcendentals=0,
        bytes_accessed=(two_t * t * itm
                        + B * t * D * x.dtype.itemsize
                        + B * two_t * D * 4))

    if nk == 1:
        grid = (B, D // tnd)
        in_specs = [
            pl.BlockSpec((two_t, t), lambda b, j: (0, 0)),
            pl.BlockSpec((pl.Squeezed(), t, tnd), lambda b, j: (b, 0, j)),
        ]
        out_specs = pl.BlockSpec((pl.Squeezed(), two_t, tnd),
                                 lambda b, j: (b, 0, j))
        scratch = []
        kernel = _dft_kernel
        dims = ("parallel", "parallel")
        vmem_need = (2 * two_t * t * itm + 2 * t * tnd * itm
                     + 2 * two_t * tnd * 4)
    else:
        grid = (B, D // tnd, nk)
        in_specs = [
            pl.BlockSpec((two_t, tk), lambda b, j, k: (0, k)),
            pl.BlockSpec((pl.Squeezed(), tk, tnd), lambda b, j, k: (b, k, j)),
        ]
        out_specs = pl.BlockSpec((pl.Squeezed(), two_t, tnd),
                                 lambda b, j, k: (b, 0, j))
        scratch = [pltpu.VMEM((two_t, tnd), jnp.float32)]
        kernel = functools.partial(_dft_kernel_acc, k_axis=2)
        dims = ("parallel", "parallel", "arbitrary")
        vmem_need = (2 * two_t * tk * itm + 2 * tk * tnd * itm
                     + 2 * two_t * tnd * 4 + two_t * tnd * 4)

    return pl.pallas_call(
        kernel,
        out_shape=jax.ShapeDtypeStruct((B, two_t, D), jnp.float32),
        grid_spec=pltpu.PrefetchScalarGridSpec(
            num_scalar_prefetch=0, grid=grid, in_specs=in_specs,
            out_specs=out_specs, scratch_shapes=scratch),
        compiler_params=_compiler_params(dims, vmem_need),
        cost_estimate=cost,
    )(w, x)


# ----------------------------------------------------------------------------
# Public wrapper == torch FreqFeatureExtractor.forward
# ----------------------------------------------------------------------------
def freq_feature_extractor(x, compute_dtype=jnp.float32):
    """x: (B, T, D) -> (B, T, 2*D) float32.

    compute_dtype=jnp.bfloat16 uses the MXU's native operand rate (accumulation
    stays f32); expect ~1e-2 relative error vs. the exact FFT in that mode.
    """
    B, T, D = x.shape

    # Fused DFT basis W = [cos; -sin], shape (2T, T).  Angles built in f64 with
    # k*n reduced mod T before scaling (better accuracy at large T).
    n = np.arange(T)
    ang = (2.0 * np.pi / T) * np.mod(np.outer(n, n), T).astype(np.float64)
    w = jnp.asarray(np.concatenate([np.cos(ang), -np.sin(ang)], axis=0),
                    dtype=compute_dtype)

    xin = x.astype(compute_dtype)

    if D % 128 == 0:
        # Native-layout path: BlockSpec DMA does the re-layout for free.
        out3 = _dft_direct(w, xin)                                  # (B, 2T, D)
        out = (out3.reshape(B, 2, T, D)
               .transpose(0, 2, 1, 3).reshape(B, T, 2 * D))
    else:
        # Lane-dense column slab (T, B*D), zero-padded to a multiple of 128
        # lanes so output stores are full-width and MXU N lanes are full.
        BD = B * D
        BDp = _round_up(BD, 128)
        x_cols = jnp.transpose(xin, (1, 0, 2)).reshape(T, BD)
        if BDp != BD:
            x_cols = jnp.pad(x_cols, ((0, 0), (0, BDp - BD)))
        out2 = _dft_slab(w, x_cols)                                 # (2T, BDp)
        out = (out2[:, :BD].reshape(2, T, B, D)
               .transpose(2, 1, 0, 3).reshape(B, T, 2 * D))
    return out


def _reference(x):
    # Pure-JAX reference of the PyTorch forward.
    ffted = jnp.fft.fft(x, axis=1)
    return jnp.concatenate(
        [jnp.real(ffted), jnp.imag(ffted)], axis=-1
    ).astype(jnp.float32)


if __name__ == "__main__":
    key = jax.random.PRNGKey(0)

    # Case 1: small D -> padded lane-dense slab path, f32 operands.
    B, T, D = 2, 8, 16
    x = jax.random.normal(key, (B, T, D), dtype=jnp.float32)
    out = jax.block_until_ready(freq_feature_extractor(x))
    ref = _reference(x)
    assert out.shape == (B, T, 2 * D), out.shape
    np.testing.assert_allclose(np.asarray(out), np.asarray(ref),
                               rtol=1e-4, atol=1e-4)

    # Case 2: D % 128 == 0 -> direct-layout path (no input transpose copy).
    B2, T2, D2 = 2, 8, 128
    x2 = jax.random.normal(jax.random.PRNGKey(1), (B2, T2, D2),
                           dtype=jnp.float32)
    out2 = jax.block_until_ready(freq_feature_extractor(x2))
    ref2 = _reference(x2)
    assert out2.shape == (B2, T2, 2 * D2), out2.shape
    np.testing.assert_allclose(np.asarray(out2), np.asarray(ref2),
                               rtol=1e-4, atol=1e-4)

    # Case 3: bf16 operand path (native MXU rate), f32 accumulation.
    out_bf = jax.block_until_ready(
        freq_feature_extractor(x, compute_dtype=jnp.bfloat16))
    np.testing.assert_allclose(np.asarray(out_bf), np.asarray(ref),
                               rtol=1e-1, atol=1e-1)

    print("KERNEL_OK")
</pallas_src>

<mosaic_0001>
module attributes {stable_mosaic.version = 11 : i64} {
  func.func @_dft_kernel(%arg0: i32, %arg1: memref<16x8xf32, #tpu.memory_space<vmem>>, %arg2: memref<8x128xf32, #tpu.memory_space<vmem>>, %arg3: memref<16x128xf32, #tpu.memory_space<vmem>>) attributes {dimension_semantics = [#tpu.dimension_semantics<parallel>], iteration_bounds = array<i64: 1>, scalar_prefetch = 0 : i64, scratch_operands = 0 : i64, tpu.core_type = #tpu.core_type<tc>, window_params = [{pipeline_mode = #tpu.pipeline_mode<synchronous>, transform_indices = @transform_0, window_bounds = array<i64: 16, 8>}, {transform_indices = @transform_1, window_bounds = array<i64: 8, 128>}, {transform_indices = @transform_2, window_bounds = array<i64: 16, 128>}]} {
    %c0 = arith.constant 0 : index
    %c0_0 = arith.constant 0 : index
    %0 = vector.load %arg1[%c0, %c0_0] : memref<16x8xf32, #tpu.memory_space<vmem>>, vector<16x8xf32>
    %c0_1 = arith.constant 0 : index
    %c0_2 = arith.constant 0 : index
    %1 = vector.load %arg2[%c0_1, %c0_2] : memref<8x128xf32, #tpu.memory_space<vmem>>, vector<8x128xf32>
    %cst = arith.constant dense<0.000000e+00> : vector<16x128xf32>
    %2 = tpu.matmul %0, %1, %cst {dimension_numbers = #tpu.dot_dimension_numbers<[1], [0], [0], [1], [0, 0, 1, 1], [], []>} : vector<16x8xf32>, vector<8x128xf32>, vector<16x128xf32> -> vector<16x128xf32>
    %c0_3 = arith.constant 0 : index
    %c0_4 = arith.constant 0 : index
    %3 = vector.load %arg3[%c0_3, %c0_4] : memref<16x128xf32, #tpu.memory_space<vmem>>, vector<16x128xf32>
    tpu.vector_store %arg3[%c0_3, %c0_4], %2 {strides = array<i32>} : memref<16x128xf32, #tpu.memory_space<vmem>>, vector<16x128xf32>,
    return
  }
  func.func @transform_0(%arg0: i32) -> (i32, i32) {
    %c0_i32 = arith.constant 0 : i32
    %c0_i32_0 = arith.constant 0 : i32
    %c0_i32_1 = arith.constant 0 : i32
    return %c0_i32, %c0_i32_0 : i32, i32
  }
  func.func @transform_1(%arg0: i32) -> (i32, i32) {
    %c0_i32 = arith.constant 0 : i32
    %c0_i32_0 = arith.constant 0 : i32
    return %c0_i32, %arg0 : i32, i32
  }
  func.func @transform_2(%arg0: i32) -> (i32, i32) {
    %c0_i32 = arith.constant 0 : i32
    %c0_i32_0 = arith.constant 0 : i32
    return %c0_i32, %arg0 : i32, i32
  }
}

</mosaic_0001>

<llo_original>
// kernel: tpu_custom_call.1
$region0: #{tpu_custom_call.1}
  #allocation0 [shape = 'u32[]', space=smem, size = 0x4, offset = 0x4, fixed_abs, tag = 'smem constant byte address 0x4 - core index']
  #allocation1 [shape = 'u32[72,128]{1,0:T(1,128)}', space=vmem, size = 0x9000, scoped, tag = 'internal scratch']
  %s0 = inlined_call_operand.vmem [shape: f32[16,8], index: 0, kind: input, shape index: {}]
  %s1 = inlined_call_operand.vmem [shape: f32[8,128], index: 1, kind: input, shape index: {}]
  %s2 = inlined_call_operand.hbm [shape: f32[16,128], index: 2, kind: output, shape index: {}]
  %s3 = sld [smem:[#allocation0]]
  $region18: #{tpu_custom_call.1} parent=0
    _
  %s5 = ssub.s32 1, %s3
  %s6 = scalar_select 0, %s5, %s3
  $region1: #{tpu_custom_call.1} parent=0
    #allocation2 [shape = 'u8[8192]{0}', space=vmem, size = 0x2000, scoped, tag = 'output window, operand 0, single buffered']
    #allocation3 [shape = 's32[1]{0}', space=sflag, size = 0x4, scoped, tag = 'scoped memory for tpu_custom_call.1']
    %7 = vsyncpa [#allocation3], 0
    // Predicated region
    $region2: #{tpu_custom_call.1} parent=1 // pred_check
      _
    $region3: #{tpu_custom_call.1} parent=1 // pred_check_branch
      %9 = sbr.rel (0) target = $region5
    $region4: #{tpu_custom_call.1} parent=1 // pred_region
      _
    $region5: #{tpu_custom_call.1} parent=1 // pred_fallthru
      _
    // Predicated region
    $region6: #{tpu_custom_call.1} parent=1 // pred_check
      _
    $region7: #{tpu_custom_call.1} parent=1 // pred_check_branch
      %11 = sbr.rel (0) target = $region9
    $region8: #{tpu_custom_call.1} parent=1 // pred_region
      _
    $region9: #{tpu_custom_call.1} parent=1 // pred_fallthru
      _
    %v12 = vld [vmem:[%s0] sm:$0xff]
    %v13 = vld [vmem:[%s0 + $0x8] sm:$0xff]
    %v14 = vld [vmem:[%s1] sm:$0xff]
    %vm15 = vcmask 64512
    %v17 = vsel %vm15, %v12, 0
    %v20 = vsel %vm15, %v13, 0
    %22 = vmatpush.msra.mxu0 0.0
    %23 = vmatpush.msra.mxu0 0.0
    %24 = vmatpush.msra.mxu0 0.0
    %25 = vmatpush.msra.mxu0 0.0
    %26 = vmatpush.msra.mxu0 0.0
    %27 = vmatpush.msra.mxu0 0.0
    %28 = vmatpush.msra.mxu0 0.0
    %29 = vmatpush.msra.mxu0 0.0
    %30 = vmatpush.msra.mxu0 0.0
    %31 = vmatpush.msra.mxu0 0.0
    %32 = vmatpush.msra.mxu0 0.0
    %33 = vmatpush.msra.mxu0 0.0
    %34 = vmatpush.msra.mxu0 0.0
    %35 = vmatpush.msra.mxu0 0.0
    %36 = vmatpush.msra.mxu0 0.0
    %37 = vmatpush.msra.mxu0 %v14
    %38 = vmatmul.f32.gmra.mxu0 %v17
    %v39 = vpop.f32.mrf.mxu0
    %v40 = vadd.f32 0.0, %v39
    %41 = vmatmul.f32.gmra.mxu0 %v20
    %v42 = vpop.f32.mrf.mxu0
    %v43 = vadd.f32 0.0, %v42
    %44 = vdwg.mxu0
    %45 = vst [vmem:[#allocation2] sm:$0xff] %v40
    %46 = vst [vmem:[#allocation2 + $0x8] sm:$0xff] %v43
    // Predicated region
    $region10: #{tpu_custom_call.1} parent=1 // pred_check
      _
    $region11: #{tpu_custom_call.1} parent=1 // pred_check_branch
      %48 = sbr.rel (0) target = $region13
    $region12: #{tpu_custom_call.1} parent=1 // pred_region
      %50 = vsyncadd [#allocation3], 0
      %s51 = sshll.u32 [#allocation2], 4
      %s52 = int_to_ptr.vmem [resolvable:$true] %s51
      %s53 = sshll.u32 %s2, 4
      %s54 = int_to_ptr.hbm [resolvable:$true] %s53
      %59 = dma.vmem_to_hbm [thread:$0]  %s52, 256, %s54, [#allocation3], 128, 128, 8
    $region13: #{tpu_custom_call.1} parent=1 // pred_fallthru
      _
    // Predicated region
    $region14: #{tpu_custom_call.1} parent=1 // pred_check
      _
    $region15: #{tpu_custom_call.1} parent=1 // pred_check_branch
      %61 = sbr.rel (0) target = $region17
    $region16: #{tpu_custom_call.1} parent=1 // pred_region
      %63 = dma.done [#allocation3], 256
    $region17: #{tpu_custom_call.1} parent=1 // pred_fallthru
      _
    %64 = vsyncpa [#allocation3], 1

</llo_original>
